<compile_context>
chip_gen: v7x
topology: tpu7x:2x2x1
jax: 0.10.0
libtpu: 0.0.40
codegen_flags: <defaults>
</compile_context>

<pallas_src>
import functools

import jax
import jax.numpy as jnp
from jax.experimental import pallas as pl
from jax.experimental.pallas import tpu as pltpu

FEAT_SIZE = 32    # cfg.MODEL.ROI_BOX_HEAD.MLP_HEAD_DIM
OUTPUT_DIM = 16   # cfg.MODEL.RELATION.FEATURE_REFINE.MP_UNIT_OUTPUT_DIM
N_EDGES = 8       # number of (source, target) pairs in the small test


def _round_up(x, m):
    return (x + m - 1) // m * m


def _cdiv(a, b):
    return (a + b - 1) // b


def prepare_params(weight, bias, param_dtype=jnp.float32):
    """One-time parameter preparation (hoisted out of the per-call path).

    weight: [D, 2F] (PyTorch Linear layout), bias: [D].
    Returns (w_src [F, D], w_tgt [F, D], b2d [1, D]).  Splitting the transposed
    weight lets the kernel consume source/target directly (no wrapper concat).
    """
    w_t = jnp.asarray(weight, param_dtype).T                # [2F, D]
    f = w_t.shape[0] // 2
    b2d = jnp.asarray(bias, jnp.float32).reshape(1, -1)     # added to f32 logits
    return w_t[:f], w_t[f:], b2d


def _default_parallel_partials():
    """Dual-TensorCore chips (v7x) benefit from 'parallel' tile sharding with
    per-tile partial sums; single-TC v5e/v6e prefer the resident accumulator."""
    try:
        kind = jax.devices()[0].device_kind.lower()
    except Exception:  # pragma: no cover - defensive
        return False
    return "v7" in kind or "7x" in kind


def _masked_source_gate(src_ref, tgt_ref, ws_ref, wt_ref, b_ref, inv_d):
    """Shared compute: source * mean_over_D(sigmoid(relu(x @ W + b)))  -> [T, F] f32."""
    src = src_ref[...]                                                   # [T, F]
    logits = (jnp.dot(src, ws_ref[...], preferred_element_type=jnp.float32)
              + jnp.dot(tgt_ref[...], wt_ref[...], preferred_element_type=jnp.float32)
              + b_ref[...])                                              # [T, D] f32
    gate = jax.nn.sigmoid(jnp.maximum(logits, 0.0))                      # [T, D] f32
    gate = jnp.sum(gate, axis=1, keepdims=True) * inv_d                  # mean over D
    return src.astype(jnp.float32) * gate                                # [T, F] f32


def _make_msg_kernel(inv_d):
    """summerize=False: write the per-row massage; partial tail blocks are
    store-masked by Pallas, so no explicit row mask is needed."""
    def kernel(src_ref, tgt_ref, ws_ref, wt_ref, b_ref, msg_ref):
        msg = _masked_source_gate(src_ref, tgt_ref, ws_ref, wt_ref, b_ref, inv_d)
        msg_ref[...] = msg.astype(msg_ref.dtype)
    return kernel


def _make_sum_kernel(tile, n, inv_d, inv_n, needs_mask, partials):
    """summerize=True: per-tile reduction.

    partials=False -> resident (8, F) accumulator (grid axis 'arbitrary').
    partials=True  -> per-tile (8, F) partial-sum block (grid axis 'parallel').
    """
    def kernel(src_ref, tgt_ref, ws_ref, wt_ref, b_ref, out_ref):
        i = pl.program_id(0)
        contrib = _masked_source_gate(src_ref, tgt_ref, ws_ref, wt_ref, b_ref, inv_d)
        if needs_mask:
            # Ragged last tile: zero out-of-range rows before the reduction.
            row = i * tile + jax.lax.broadcasted_iota(jnp.int32, contrib.shape, 0)
            contrib = jnp.where(row < n, contrib, 0.0)
        tile_sum = jnp.sum(contrib, axis=0, keepdims=True)               # [1, F]

        if partials:
            # Sublane-replicate to the (8, F) store tile; epilogue sums every
            # replicated row (gather-free) and scales by 1/(8*N).
            out_ref[...] = jnp.broadcast_to(tile_sum, out_ref.shape)
        else:
            @pl.when(i == 0)
            def _():
                out_ref[...] = jnp.zeros_like(out_ref)

            out_ref[...] = out_ref[...] + jnp.broadcast_to(tile_sum, out_ref.shape)

            @pl.when(i == pl.num_programs(0) - 1)
            def _():
                out_ref[...] = out_ref[...] * inv_n
    return kernel


@functools.partial(jax.jit, static_argnames=("summerize", "tile_n", "parallel_partials"))
def _massage_pallas(source_feat, target_feat, w_src, w_tgt, b2d, summerize, tile_n,
                    parallel_partials):
    n, feat = source_feat.shape
    two_feat, d = w_src.shape[0] * 2, w_src.shape[1]
    assert two_feat == 2 * feat and w_tgt.shape == (feat, d)

    # Row tiling: one full-extent block for small N, else multiple-of-8 tiles with a
    # (masked) ragged last block.  No wrapper-side padding or output slicing.
    tile_req = max(8, _round_up(int(tile_n), 8))
    if n <= tile_req:
        tile, num_tiles = n, 1            # block == full array dims (any N allowed)
    else:
        tile, num_tiles = tile_req, _cdiv(n, tile_req)
    needs_mask = (num_tiles * tile != n)

    inv_d = 1.0 / d
    inv_n = 1.0 / n

    in_specs = [
        pl.BlockSpec((tile, feat), lambda i: (i, 0)),   # source tile (row-blocked)
        pl.BlockSpec((tile, feat), lambda i: (i, 0)),   # target tile (row-blocked)
        pl.BlockSpec((feat, d), lambda i: (0, 0)),      # w_src, VMEM-resident
        pl.BlockSpec((feat, d), lambda i: (0, 0)),      # w_tgt, VMEM-resident
        pl.BlockSpec((1, d), lambda i: (0, 0)),         # bias, VMEM-resident
    ]
    args = (source_feat, target_feat, w_src, w_tgt, b2d)

    if not summerize:
        return pl.pallas_call(
            _make_msg_kernel(inv_d),
            grid=(num_tiles,),
            in_specs=in_specs,
            out_specs=pl.BlockSpec((tile, feat), lambda i: (i, 0)),
            out_shape=jax.ShapeDtypeStruct((n, feat), source_feat.dtype),
            compiler_params=pltpu.CompilerParams(dimension_semantics=("parallel",)),
        )(*args)

    kernel = _make_sum_kernel(tile, n, inv_d, inv_n, needs_mask, parallel_partials)

    if parallel_partials:
        # v7x: keep the grid axis "parallel" so tiles shard across both TensorCores;
        # tiny gather-free XLA epilogue reduces the per-tile partial sums.
        partials = pl.pallas_call(
            kernel,
            grid=(num_tiles,),
            in_specs=in_specs,
            out_specs=pl.BlockSpec((8, feat), lambda i: (i, 0)),
            out_shape=jax.ShapeDtypeStruct((num_tiles * 8, feat), jnp.float32),
            compiler_params=pltpu.CompilerParams(dimension_semantics=("parallel",)),
        )(*args)
        return (partials.sum(axis=0) * (1.0 / (8.0 * n))).astype(source_feat.dtype)

    # v5e/v6e: resident VMEM accumulator; no partials writeback, no epilogue kernel.
    acc = pl.pallas_call(
        kernel,
        grid=(num_tiles,),
        in_specs=in_specs,
        out_specs=pl.BlockSpec((8, feat), lambda i: (0, 0)),
        out_shape=jax.ShapeDtypeStruct((8, feat), jnp.float32),
        compiler_params=pltpu.CompilerParams(dimension_semantics=("arbitrary",)),
    )(*args)
    return acc[0].astype(source_feat.dtype)


@functools.partial(jax.jit, static_argnames=("summerize",))
def _massage_xla(source_feat, target_feat, w_src, w_tgt, b2d, summerize):
    """Tiny-N fallback: the fused XLA expression beats kernel-launch overhead."""
    logits = source_feat @ w_src + target_feat @ w_tgt + b2d
    gate = jax.nn.sigmoid(jax.nn.relu(logits)).mean(axis=1)
    massage = source_feat * gate[:, None]
    return massage.mean(axis=0) if summerize else massage


def massage_generator(source_feat, target_feat, w_src, w_tgt, b2d, summerize=True,
                      tile_n=4096, parallel_partials=None, xla_fallback_rows=1024):
    """source_feat/target_feat: [N, F]; params from prepare_params()."""
    n = source_feat.shape[0]
    if n <= xla_fallback_rows:
        return _massage_xla(source_feat, target_feat, w_src, w_tgt, b2d, summerize)
    if parallel_partials is None:
        parallel_partials = _default_parallel_partials()
    return _massage_pallas(source_feat, target_feat, w_src, w_tgt, b2d,
                           bool(summerize), int(tile_n), bool(parallel_partials))


def _reference(source_feat, target_feat, weight, bias, summerize=True):
    concated = jnp.concatenate([source_feat, target_feat], axis=1)
    gate = jax.nn.sigmoid(jax.nn.relu(concated @ weight.T + bias)).mean(axis=1)
    massage = source_feat * gate[:, None]
    return massage.mean(0) if summerize else massage


if __name__ == "__main__":
    key = jax.random.PRNGKey(0)
    k1, k2, k3, k4, k5, k6 = jax.random.split(key, 6)

    src = jax.random.normal(k1, (N_EDGES, FEAT_SIZE), jnp.float32)
    tgt = jax.random.normal(k2, (N_EDGES, FEAT_SIZE), jnp.float32)

    # Deterministic PyTorch-style Linear init (uniform +/- 1/sqrt(fan_in)).
    bound = 1.0 / float(jnp.sqrt(2.0 * FEAT_SIZE))
    weight = jax.random.uniform(k3, (OUTPUT_DIM, 2 * FEAT_SIZE), jnp.float32, -bound, bound)
    bias = jax.random.uniform(k4, (OUTPUT_DIM,), jnp.float32, -bound, bound)

    # One-time (hoisted) parameter prep.
    w_src, w_tgt, b2d = prepare_params(weight, bias)

    tol = dict(atol=2e-5, rtol=2e-5)

    # --- Pallas path, single tile, both summerize reduction layouts -------------
    for pp in (False, True):
        out = massage_generator(src, tgt, w_src, w_tgt, b2d, summerize=True,
                                parallel_partials=pp, xla_fallback_rows=0)
        jax.block_until_ready(out)
        assert out.shape == (FEAT_SIZE,)
        assert jnp.allclose(out, _reference(src, tgt, weight, bias, True), **tol), \
            f"summerize=True mismatch (parallel_partials={pp})"

    out_full = massage_generator(src, tgt, w_src, w_tgt, b2d, summerize=False,
                                 xla_fallback_rows=0)
    jax.block_until_ready(out_full)
    assert out_full.shape == (N_EDGES, FEAT_SIZE)
    assert jnp.allclose(out_full, _reference(src, tgt, weight, bias, False), **tol), \
        "summerize=False mismatch"

    # --- Multi-tile ragged path (N=20, tile=8 -> 3 grid steps, masked tail) -----
    n_big = 20
    src_b = jax.random.normal(k5, (n_big, FEAT_SIZE), jnp.float32)
    tgt_b = jax.random.normal(k6, (n_big, FEAT_SIZE), jnp.float32)
    for pp in (False, True):
        out_b = massage_generator(src_b, tgt_b, w_src, w_tgt, b2d, summerize=True,
                                  tile_n=8, parallel_partials=pp, xla_fallback_rows=0)
        jax.block_until_ready(out_b)
        assert jnp.allclose(out_b, _reference(src_b, tgt_b, weight, bias, True), **tol), \
            f"tiled summerize=True mismatch (parallel_partials={pp})"
    out_bf = massage_generator(src_b, tgt_b, w_src, w_tgt, b2d, summerize=False,
                               tile_n=8, xla_fallback_rows=0)
    jax.block_until_ready(out_bf)
    assert jnp.allclose(out_bf, _reference(src_b, tgt_b, weight, bias, False), **tol), \
        "tiled summerize=False mismatch"

    # --- Tiny-N XLA fallback path (default threshold) ---------------------------
    out_fb = massage_generator(src, tgt, w_src, w_tgt, b2d, summerize=True)
    jax.block_until_ready(out_fb)
    assert jnp.allclose(out_fb, _reference(src, tgt, weight, bias, True), **tol), \
        "XLA fallback mismatch"

    print("KERNEL_OK")
</pallas_src>

<mosaic_0001>
module attributes {stable_mosaic.version = 11 : i64} {
  func.func @kernel(%arg0: i32, %arg1: memref<8x32xf32, #tpu.memory_space<vmem>>, %arg2: memref<8x32xf32, #tpu.memory_space<vmem>>, %arg3: memref<32x16xf32, #tpu.memory_space<vmem>>, %arg4: memref<32x16xf32, #tpu.memory_space<vmem>>, %arg5: memref<1x16xf32, #tpu.memory_space<vmem>>, %arg6: memref<8x32xf32, #tpu.memory_space<vmem>>) attributes {dimension_semantics = [#tpu.dimension_semantics<arbitrary>], iteration_bounds = array<i64: 1>, scalar_prefetch = 0 : i64, scratch_operands = 0 : i64, tpu.core_type = #tpu.core_type<tc>, window_params = [{transform_indices = @transform_0, window_bounds = array<i64: 8, 32>}, {transform_indices = @transform_1, window_bounds = array<i64: 8, 32>}, {pipeline_mode = #tpu.pipeline_mode<synchronous>, transform_indices = @transform_2, window_bounds = array<i64: 32, 16>}, {pipeline_mode = #tpu.pipeline_mode<synchronous>, transform_indices = @transform_3, window_bounds = array<i64: 32, 16>}, {pipeline_mode = #tpu.pipeline_mode<synchronous>, transform_indices = @transform_4, window_bounds = array<i64: 1, 16>}, {pipeline_mode = #tpu.pipeline_mode<synchronous>, transform_indices = @transform_5, window_bounds = array<i64: 8, 32>}]} {
    %c0 = arith.constant 0 : index
    %c0_0 = arith.constant 0 : index
    %0 = vector.load %arg1[%c0, %c0_0] : memref<8x32xf32, #tpu.memory_space<vmem>>, vector<8x32xf32>
    %c0_1 = arith.constant 0 : index
    %c0_2 = arith.constant 0 : index
    %1 = vector.load %arg3[%c0_1, %c0_2] : memref<32x16xf32, #tpu.memory_space<vmem>>, vector<32x16xf32>
    %cst = arith.constant dense<0.000000e+00> : vector<8x16xf32>
    %2 = tpu.matmul %0, %1, %cst {dimension_numbers = #tpu.dot_dimension_numbers<[1], [0], [0], [1], [0, 0, 1, 1], [], []>} : vector<8x32xf32>, vector<32x16xf32>, vector<8x16xf32> -> vector<8x16xf32>
    %c0_3 = arith.constant 0 : index
    %c0_4 = arith.constant 0 : index
    %3 = vector.load %arg2[%c0_3, %c0_4] : memref<8x32xf32, #tpu.memory_space<vmem>>, vector<8x32xf32>
    %c0_5 = arith.constant 0 : index
    %c0_6 = arith.constant 0 : index
    %4 = vector.load %arg4[%c0_5, %c0_6] : memref<32x16xf32, #tpu.memory_space<vmem>>, vector<32x16xf32>
    %cst_7 = arith.constant dense<0.000000e+00> : vector<8x16xf32>
    %5 = tpu.matmul %3, %4, %cst_7 {dimension_numbers = #tpu.dot_dimension_numbers<[1], [0], [0], [1], [0, 0, 1, 1], [], []>} : vector<8x32xf32>, vector<32x16xf32>, vector<8x16xf32> -> vector<8x16xf32>
    %6 = arith.addf %2, %5 : vector<8x16xf32>
    %c0_8 = arith.constant 0 : index
    %c0_9 = arith.constant 0 : index
    %7 = vector.load %arg5[%c0_8, %c0_9] : memref<1x16xf32, #tpu.memory_space<vmem>>, vector<1x16xf32>
    %8 = vector.broadcast %7 : vector<1x16xf32> to vector<8x16xf32>
    %9 = arith.addf %6, %8 : vector<8x16xf32>
    %cst_10 = arith.constant 0.000000e+00 : f32
    %10 = vector.broadcast %cst_10 : f32 to vector<8x16xf32>
    %11 = arith.maximumf %9, %10 : vector<8x16xf32>
    %12 = arith.negf %11 : vector<8x16xf32>
    %13 = math.exp %12 : vector<8x16xf32>
    %cst_11 = arith.constant 1.000000e+00 : f32
    %14 = vector.broadcast %cst_11 : f32 to vector<8x16xf32>
    %15 = arith.addf %14, %13 : vector<8x16xf32>
    %16 = arith.divf %14, %15 : vector<8x16xf32>
    %cst_12 = arith.constant dense<0.000000e+00> : vector<8xf32>
    %17 = vector.multi_reduction <add>, %16, %cst_12 [1] : vector<8x16xf32> to vector<8xf32>
    %18 = vector.shape_cast %17 : vector<8xf32> to vector<8x1xf32>
    %cst_13 = arith.constant 6.250000e-02 : f32
    %19 = vector.broadcast %cst_13 : f32 to vector<8x1xf32>
    %20 = arith.mulf %18, %19 : vector<8x1xf32>
    %21 = vector.broadcast %20 : vector<8x1xf32> to vector<8x32xf32>
    %22 = arith.mulf %0, %21 : vector<8x32xf32>
    %cst_14 = arith.constant dense<0.000000e+00> : vector<32xf32>
    %23 = vector.multi_reduction <add>, %22, %cst_14 [0] : vector<8x32xf32> to vector<32xf32>
    %24 = vector.shape_cast %23 : vector<32xf32> to vector<1x32xf32>
    %c0_i32 = arith.constant 0 : i32
    %25 = arith.cmpi eq, %arg0, %c0_i32 : i32
    %26 = arith.extui %25 : i1 to i32
    %c0_i32_15 = arith.constant 0 : i32
    %27 = arith.cmpi ne, %26, %c0_i32_15 : i32
    scf.if %27 {
      %cst_22 = arith.constant 0.000000e+00 : f32
      %36 = vector.broadcast %cst_22 : f32 to vector<8x32xf32>
      %c0_23 = arith.constant 0 : index
      %c0_24 = arith.constant 0 : index
      %37 = vector.load %arg6[%c0_23, %c0_24] : memref<8x32xf32, #tpu.memory_space<vmem>>, vector<8x32xf32>
      tpu.vector_store %arg6[%c0_23, %c0_24], %36 {strides = array<i32>} : memref<8x32xf32, #tpu.memory_space<vmem>>, vector<8x32xf32>,
    } else {
    }
    %c0_16 = arith.constant 0 : index
    %c0_17 = arith.constant 0 : index
    %28 = vector.load %arg6[%c0_16, %c0_17] : memref<8x32xf32, #tpu.memory_space<vmem>>, vector<8x32xf32>
    %29 = vector.shape_cast %24 : vector<1x32xf32> to vector<1x32xf32>
    %30 = vector.broadcast %29 : vector<1x32xf32> to vector<8x32xf32>
    %31 = arith.addf %28, %30 : vector<8x32xf32>
    %c0_18 = arith.constant 0 : index
    %c0_19 = arith.constant 0 : index
    %32 = vector.load %arg6[%c0_18, %c0_19] : memref<8x32xf32, #tpu.memory_space<vmem>>, vector<8x32xf32>
    tpu.vector_store %arg6[%c0_18, %c0_19], %31 {strides = array<i32>} : memref<8x32xf32, #tpu.memory_space<vmem>>, vector<8x32xf32>,
    %c0_i32_20 = arith.constant 0 : i32
    %33 = arith.cmpi eq, %arg0, %c0_i32_20 : i32
    %34 = arith.extui %33 : i1 to i32
    %c0_i32_21 = arith.constant 0 : i32
    %35 = arith.cmpi ne, %34, %c0_i32_21 : i32
    scf.if %35 {
      %c0_22 = arith.constant 0 : index
      %c0_23 = arith.constant 0 : index
      %36 = vector.load %arg6[%c0_22, %c0_23] : memref<8x32xf32, #tpu.memory_space<vmem>>, vector<8x32xf32>
      %cst_24 = arith.constant 1.250000e-01 : f32
      %37 = vector.broadcast %cst_24 : f32 to vector<8x32xf32>
      %38 = arith.mulf %36, %37 : vector<8x32xf32>
      %c0_25 = arith.constant 0 : index
      %c0_26 = arith.constant 0 : index
      %39 = vector.load %arg6[%c0_25, %c0_26] : memref<8x32xf32, #tpu.memory_space<vmem>>, vector<8x32xf32>
      tpu.vector_store %arg6[%c0_25, %c0_26], %38 {strides = array<i32>} : memref<8x32xf32, #tpu.memory_space<vmem>>, vector<8x32xf32>,
    } else {
    }
    return
  }
  func.func @transform_0(%arg0: i32) -> (i32, i32) {
    %c0_i32 = arith.constant 0 : i32
    %c0_i32_0 = arith.constant 0 : i32
    return %arg0, %c0_i32 : i32, i32
  }
  func.func @transform_1(%arg0: i32) -> (i32, i32) {
    %c0_i32 = arith.constant 0 : i32
    %c0_i32_0 = arith.constant 0 : i32
    return %arg0, %c0_i32 : i32, i32
  }
  func.func @transform_2(%arg0: i32) -> (i32, i32) {
    %c0_i32 = arith.constant 0 : i32
    %c0_i32_0 = arith.constant 0 : i32
    %c0_i32_1 = arith.constant 0 : i32
    return %c0_i32, %c0_i32_0 : i32, i32
  }
  func.func @transform_3(%arg0: i32) -> (i32, i32) {
    %c0_i32 = arith.constant 0 : i32
    %c0_i32_0 = arith.constant 0 : i32
    %c0_i32_1 = arith.constant 0 : i32
    return %c0_i32, %c0_i32_0 : i32, i32
  }
  func.func @transform_4(%arg0: i32) -> (i32, i32) {
    %c0_i32 = arith.constant 0 : i32
    %c0_i32_0 = arith.constant 0 : i32
    %c0_i32_1 = arith.constant 0 : i32
    return %c0_i32, %c0_i32_0 : i32, i32
  }
  func.func @transform_5(%arg0: i32) -> (i32, i32) {
    %c0_i32 = arith.constant 0 : i32
    %c0_i32_0 = arith.constant 0 : i32
    %c0_i32_1 = arith.constant 0 : i32
    return %c0_i32, %c0_i32_0 : i32, i32
  }
}

</mosaic_0001>

<llo_original>
// kernel: _massage_pallas.1
$region0: #{_massage_pallas.1}
  #allocation0 [shape = 'u32[]', space=smem, size = 0x4, offset = 0x4, fixed_abs, tag = 'smem constant byte address 0x4 - core index']
  #allocation1 [shape = 'u32[144,128]{1,0:T(1,128)}', space=vmem, size = 0x12000, scoped, tag = 'internal scratch']
  %s0 = inlined_call_operand.vmem [shape: f32[8,32], index: 0, kind: input, shape index: {}]
  %s1 = inlined_call_operand.vmem [shape: f32[8,32], index: 1, kind: input, shape index: {}]
  %s2 = inlined_call_operand.vmem [shape: f32[32,16], index: 2, kind: input, shape index: {}]
  %s3 = inlined_call_operand.vmem [shape: f32[32,16], index: 3, kind: input, shape index: {}]
  %s4 = inlined_call_operand.vmem [shape: f32[1,16], index: 4, kind: input, shape index: {}]
  %s5 = inlined_call_operand.vmem [shape: f32[8,32], index: 5, kind: output, shape index: {}]
  %s6 = sld [smem:[#allocation0]]
  $region38: #{_massage_pallas.1} parent=0
    _
  %s8 = ssub.s32 1, %s6
  %s9 = scalar_select 0, %s8, %s6
  // Predicated region
  $region2: #{_massage_pallas.1} parent=0 // pred_check
    _
  $region3: #{_massage_pallas.1} parent=0 // pred_check_branch
    %11 = sbr.rel (0) target = $region5
  $region4: #{_massage_pallas.1} parent=0 // pred_region
    _
  $region5: #{_massage_pallas.1} parent=0 // pred_fallthru
    _
  // Predicated region
  $region6: #{_massage_pallas.1} parent=0 // pred_check
    _
  $region7: #{_massage_pallas.1} parent=0 // pred_check_branch
    %13 = sbr.rel (0) target = $region9
  $region8: #{_massage_pallas.1} parent=0 // pred_region
    _
  $region9: #{_massage_pallas.1} parent=0 // pred_fallthru
    _
  // Predicated region
  $region10: #{_massage_pallas.1} parent=0 // pred_check
    _
  $region11: #{_massage_pallas.1} parent=0 // pred_check_branch
    %15 = sbr.rel (0) target = $region13
  $region12: #{_massage_pallas.1} parent=0 // pred_region
    _
  $region13: #{_massage_pallas.1} parent=0 // pred_fallthru
    _
  // Predicated region
  $region14: #{_massage_pallas.1} parent=0 // pred_check
    _
  $region15: #{_massage_pallas.1} parent=0 // pred_check_branch
    %17 = sbr.rel (0) target = $region17
  $region16: #{_massage_pallas.1} parent=0 // pred_region
    _
  $region17: #{_massage_pallas.1} parent=0 // pred_fallthru
    _
  // Predicated region
  $region18: #{_massage_pallas.1} parent=0 // pred_check
    _
  $region19: #{_massage_pallas.1} parent=0 // pred_check_branch
    %19 = sbr.rel (0) target = $region21
  $region20: #{_massage_pallas.1} parent=0 // pred_region
    _
  $region21: #{_massage_pallas.1} parent=0 // pred_fallthru
    _
  %v20 = vld [vmem:[%s0] sm:$0xff]
  %v21 = vld [vmem:[%s2] sm:$0xff]
  %v22 = vld [vmem:[%s2 + $0x8] sm:$0xff]
  %v23 = vld [vmem:[%s2 + $0x10] sm:$0xff]
  %v24 = vld [vmem:[%s2 + $0x18] sm:$0xff]
  %v25 = vld [vmem:[%s1] sm:$0xff]
  %v26 = vld [vmem:[%s3] sm:$0xff]
  %v27 = vld [vmem:[%s3 + $0x8] sm:$0xff]
  %v28 = vld [vmem:[%s3 + $0x10] sm:$0xff]
  %v29 = vld [vmem:[%s3 + $0x18] sm:$0xff]
  %vm30 = vcmask 261120
  %v32 = vsel %vm30, %v25, 0
  %34 = vmatprep.subr.mxu0 0.0
  %35 = vmatpush1.msra.mxu0 %v26
  %36 = vmatprep.subr.mxu0 0.0
  %37 = vmatpush1.msra.mxu0 %v27
  %38 = vmatprep.subr.mxu0 0.0
  %39 = vmatpush1.msra.mxu0 %v28
  %40 = vmatprep.subr.mxu0 0.0
  %41 = vmatpush1.msra.mxu0 %v29
  %42 = vmatprep.subr.mxu0 0.0
  %43 = vmatpush1.msra.mxu0 0.0
  %44 = vmatprep.subr.mxu0 0.0
  %45 = vmatpush1.msra.mxu0 0.0
  %46 = vmatprep.subr.mxu0 0.0
  %47 = vmatpush1.msra.mxu0 0.0
  %48 = vmatprep.subr.mxu0 0.0
  %49 = vmatpush1.msra.mxu0 0.0
  %50 = vmatprep.subr.mxu0 0.0
  %51 = vmatpush1.msra.mxu0 0.0
  %52 = vmatprep.subr.mxu0 0.0
  %53 = vmatpush1.msra.mxu0 0.0
  %54 = vmatprep.subr.mxu0 0.0
  %55 = vmatpush1.msra.mxu0 0.0
  %56 = vmatprep.subr.mxu0 0.0
  %57 = vmatpush1.msra.mxu0 0.0
  %58 = vmatprep.subr.mxu0 0.0
  %59 = vmatpush1.msra.mxu0 0.0
  %60 = vmatprep.subr.mxu0 0.0
  %61 = vmatpush1.msra.mxu0 0.0
  %62 = vmatprep.subr.mxu0 0.0
  %63 = vmatpush1.msra.mxu0 0.0
  %64 = vmatprep.subr.mxu0 0.0
  %65 = vmatpush1.msra.mxu0 0.0
  %66 = vmatprep.subr.mxu0 0.0
  %67 = vmatpush1.msra.mxu0 0.0
  %68 = vmatprep.subr.mxu0 0.0
  %69 = vmatpush1.msra.mxu0 0.0
  %70 = vmatprep.subr.mxu0 0.0
  %71 = vmatpush1.msra.mxu0 0.0
  %72 = vmatprep.subr.mxu0 0.0
  %73 = vmatpush1.msra.mxu0 0.0
  %74 = vmatprep.subr.mxu0 0.0
  %75 = vmatpush1.msra.mxu0 0.0
  %76 = vmatprep.subr.mxu0 0.0
  %77 = vmatpush1.msra.mxu0 0.0
  %78 = vmatprep.subr.mxu0 0.0
  %79 = vmatpush1.msra.mxu0 0.0
  %80 = vmatprep.subr.mxu0 0.0
  %81 = vmatpush1.msra.mxu0 0.0
  %82 = vmatprep.subr.mxu0 0.0
  %83 = vmatpush1.msra.mxu0 0.0
  %84 = vmatprep.subr.mxu0 0.0
  %85 = vmatpush1.msra.mxu0 0.0
  %86 = vmatprep.subr.mxu0 0.0
  %87 = vmatpush1.msra.mxu0 0.0
  %88 = vmatprep.subr.mxu0 0.0
  %89 = vmatpush1.msra.mxu0 0.0
  %90 = vmatprep.subr.mxu0 0.0
  %91 = vmatpush1.msra.mxu0 0.0
  %92 = vmatprep.subr.mxu0 0.0
  %93 = vmatpush1.msra.mxu0 0.0
  %94 = vmatprep.subr.mxu0 0.0
  %95 = vmatpush1.msra.mxu0 0.0
  %96 = vmatprep.subr.mxu0 0.0
  %97 = vmatpush1.msra.mxu0 0.0
  %98 = vmatprep.mubr.f32.mxu0 0.0
  %99 = vmatmul.mubr.f32.gmra.mrb[0].mxu0 %v32
  %v100 = vpop.f32.mrb[0].mxu0
  %v101 = vadd.f32 0.0, %v100
  %v102 = vpop.f32.mrb[0].mxu0
  %103 = vdwg.mxu0
  %v105 = vsel %vm30, %v20, 0
  %107 = vmatprep.subr.mxu0 0.0
  %108 = vmatpush1.msra.mxu0 %v21
  %109 = vmatprep.subr.mxu0 0.0
  %110 = vmatpush1.msra.mxu0 %v22
  %111 = vmatprep.subr.mxu0 0.0
  %112 = vmatpush1.msra.mxu0 %v23
  %113 = vmatprep.subr.mxu0 0.0
  %114 = vmatpush1.msra.mxu0 %v24
  %115 = vmatprep.subr.mxu0 0.0
  %116 = vmatpush1.msra.mxu0 0.0
  %117 = vmatprep.subr.mxu0 0.0
  %118 = vmatpush1.msra.mxu0 0.0
  %119 = vmatprep.subr.mxu0 0.0
  %120 = vmatpush1.msra.mxu0 0.0
  %121 = vmatprep.subr.mxu0 0.0
  %122 = vmatpush1.msra.mxu0 0.0
  %123 = vmatprep.subr.mxu0 0.0
  %124 = vmatpush1.msra.mxu0 0.0
  %125 = vmatprep.subr.mxu0 0.0
  %126 = vmatpush1.msra.mxu0 0.0
  %127 = vmatprep.subr.mxu0 0.0
  %128 = vmatpush1.msra.mxu0 0.0
  %129 = vmatprep.subr.mxu0 0.0
  %130 = vmatpush1.msra.mxu0 0.0
  %131 = vmatprep.subr.mxu0 0.0
  %132 = vmatpush1.msra.mxu0 0.0
  %133 = vmatprep.subr.mxu0 0.0
  %134 = vmatpush1.msra.mxu0 0.0
  %135 = vmatprep.subr.mxu0 0.0
  %136 = vmatpush1.msra.mxu0 0.0
  %137 = vmatprep.subr.mxu0 0.0
  %138 = vmatpush1.msra.mxu0 0.0
  %139 = vmatprep.subr.mxu0 0.0
  %140 = vmatpush1.msra.mxu0 0.0
  %141 = vmatprep.subr.mxu0 0.0
  %142 = vmatpush1.msra.mxu0 0.0
  %143 = vmatprep.subr.mxu0 0.0
  %144 = vmatpush1.msra.mxu0 0.0
  %145 = vmatprep.subr.mxu0 0.0
  %146 = vmatpush1.msra.mxu0 0.0
  %147 = vmatprep.subr.mxu0 0.0
  %148 = vmatpush1.msra.mxu0 0.0
  %149 = vmatprep.subr.mxu0 0.0
  %150 = vmatpush1.msra.mxu0 0.0
  %151 = vmatprep.subr.mxu0 0.0
  %152 = vmatpush1.msra.mxu0 0.0
  %153 = vmatprep.subr.mxu0 0.0
  %154 = vmatpush1.msra.mxu0 0.0
  %155 = vmatprep.subr.mxu0 0.0
  %156 = vmatpush1.msra.mxu0 0.0
  %157 = vmatprep.subr.mxu0 0.0
  %158 = vmatpush1.msra.mxu0 0.0
  %159 = vmatprep.subr.mxu0 0.0
  %160 = vmatpush1.msra.mxu0 0.0
  %161 = vmatprep.subr.mxu0 0.0
  %162 = vmatpush1.msra.mxu0 0.0
  %163 = vmatprep.subr.mxu0 0.0
  %164 = vmatpush1.msra.mxu0 0.0
  %165 = vmatprep.subr.mxu0 0.0
  %166 = vmatpush1.msra.mxu0 0.0
  %167 = vmatprep.subr.mxu0 0.0
  %168 = vmatpush1.msra.mxu0 0.0
  %169 = vmatprep.subr.mxu0 0.0
  %170 = vmatpush1.msra.mxu0 0.0
  %171 = vmatprep.mubr.f32.mxu0 0.0
  %172 = vmatmul.mubr.f32.gmra.mrb[0].mxu0 %v105
  %v173 = vpop.f32.mrb[0].mxu0
  %v174 = vadd.f32 %v101, %v173
  %v175 = vpop.f32.mrb[0].mxu0
  %176 = vdwg.mxu0
  %v177 = vld [vmem:[%s4] sm:$0x1]
  %v179 = vlaneseq
  %v180 = vshrl.u32 %v179, 7
  %v181 = vsub.s32 0, %v180
  %v182 = vrot.slane %v177, %v181
  %v184 = vadd.f32 %v174, %v182
  %v185 = vmax.f32 %v184, 0.0
  %v186 = vxor.u32 %v185, 2147483648
  %v187 = vmul.f32 %v186, 1.442695
  %v188 = vpow.pop %v187
  %v189 = vadd.f32 %v188, 1.0
  %v190 = vrcp.pop %v189
  %v191 = vmul.f32 1.0, %v190
  %vm192 = vcmask 130048
  %v193 = vsel %vm192, %v191, 0.0
  %194 = vadd.xlane.f32.xlu0 %v193
  %v195 = vpop.xlane.xlu0 %194
  %v196 = vmul.f32 %v195, 0.0625
  %v197 = vmul.f32 %v20, %v196
  %v198 = vsel %vm30, %v197, 0.0
  %v199 = vrot.slane %v198, 4
  %v200 = vadd.f32 %v198, %v199
  %v201 = vrot.slane %v200, 2
  %v202 = vadd.f32 %v200, %v201
  %v203 = vrot.slane %v202, 1
  %v204 = vadd.f32 %v202, %v203
  %p205 = scmp.eq.s32.totalorder 0, 0
  // Predicated region
  $region22: #{_massage_pallas.1} parent=0 // pred_check
    %p206 = pneg %p205
  $region23: #{_massage_pallas.1} parent=0 // pred_check_branch
    %208 = sbr.rel (%p206) target = $region25
  $region24: #{_massage_pallas.1} parent=0 // pred_region
    %209 = vst.msk [vmem:[%s5] sm:$0xff] %vm30, 0.0
  $region25: #{_massage_pallas.1} parent=0 // pred_fallthru
    _
  %v210 = vld [vmem:[%s5] sm:$0xff]
  %v211 = vadd.f32 %v210, %v204
  %212 = vst.msk [vmem:[%s5] sm:$0xff] %vm30, %v211
  // Predicated region
  $region26: #{_massage_pallas.1} parent=0 // pred_check
    %p213 = pneg %p205
  $region27: #{_massage_pallas.1} parent=0 // pred_check_branch
    %215 = sbr.rel (%p213) target = $region29
  $region28: #{_massage_pallas.1} parent=0 // pred_region
    %v216 = vld [vmem:[%s5] sm:$0xff]
    %v217 = vmul.f32 %v216, 0.125
    %218 = vst.msk [vmem:[%s5] sm:$0xff] %vm30, %v217
  $region29: #{_massage_pallas.1} parent=0 // pred_fallthru
    _
  // Predicated region
  $region30: #{_massage_pallas.1} parent=0 // pred_check
    _
  $region31: #{_massage_pallas.1} parent=0 // pred_check_branch
    %220 = sbr.rel (0) target = $region33
  $region32: #{_massage_pallas.1} parent=0 // pred_region
    _
  $region33: #{_massage_pallas.1} parent=0 // pred_fallthru
    _
  // Predicated region
  $region34: #{_massage_pallas.1} parent=0 // pred_check
    _
  $region35: #{_massage_pallas.1} parent=0 // pred_check_branch
    %222 = sbr.rel (0) target = $region37
  $region36: #{_massage_pallas.1} parent=0 // pred_region
    _
  $region37: #{_massage_pallas.1} parent=0 // pred_fallthru
    _

</llo_original>
